<compile_context>
chip_gen: v6e
topology: v6e:2x2x1
jax: 0.10.0
libtpu: 0.0.40
codegen_flags: <defaults>
</compile_context>

<pallas_src>
import jax
import jax.numpy as jnp
from jax.experimental import pallas as pl
from jax.experimental.pallas import tpu as pltpu

_WIDE_LANE_CANDIDATES = (32768, 16384, 8192, 4096, 2048, 1024, 512, 256, 128)
_RAGGED_BLOCK_ELEMS = 256 * 1024   # conservative 1-D block (~1 MiB for f32) for ragged n


def _cdiv(a: int, b: int) -> int:
    return -(-a // b)


def _round_up(a: int, b: int) -> int:
    return _cdiv(a, b) * b


def _sublane_tile(dtype) -> int:
    # Native sublane packing: 8 rows for 32-bit, 16 for 16-bit, 32 for 8-bit dtypes.
    return {4: 8, 2: 16, 1: 32}.get(jnp.dtype(dtype).itemsize, 8)


def _tpu_config():
    """Returns (num_cores, target_block_bytes, vmem_limit_bytes, dim_semantics_candidates)."""
    kind = ""
    try:
        kind = str(getattr(jax.devices()[0], "device_kind", "")).lower()
    except Exception:
        pass
    is_v7x = ("v7" in kind) or ("tpu7" in kind)
    if is_v7x:
        core_par = getattr(pltpu, "CORE_PARALLEL", None)
        sems = [(core_par,), ("parallel",)] if core_par is not None else [("parallel",)]
        # 8 MiB blocks: 4 double-buffered 8 MiB buffers = 32 MiB << 64 MiB/TC VMEM.
        return 2, 8 * 1024 * 1024, 48 * 1024 * 1024, sems
    # v5e / v6e: single TensorCore, 128 MiB VMEM; ~4 MiB blocks are near roofline.
    return 1, 4 * 1024 * 1024, 32 * 1024 * 1024, [("parallel",)]


def _relu_kernel(x_ref, o_ref):
    # Purely memory-bound elementwise max on the whole VMEM tile (VPU).
    x = x_ref[...]
    o_ref[...] = jnp.maximum(x, jnp.zeros((), dtype=x.dtype))


def _call_relu(x_nd, block_shape, grid, index_map, sem_candidates, vmem_limit, n, itemsize):
    last_err = None
    for sems in sem_candidates:
        try:
            return pl.pallas_call(
                _relu_kernel,
                out_shape=jax.ShapeDtypeStruct(x_nd.shape, x_nd.dtype),
                grid=grid,
                in_specs=[pl.BlockSpec(block_shape, index_map)],
                out_specs=pl.BlockSpec(block_shape, index_map),
                compiler_params=pltpu.CompilerParams(
                    dimension_semantics=sems,
                    vmem_limit_bytes=vmem_limit),
                cost_estimate=pl.CostEstimate(
                    flops=n, transcendentals=0, bytes_accessed=2 * n * itemsize),
            )(x_nd)
        except Exception as e:   # e.g. CORE_PARALLEL unsupported -> retry with "parallel"
            last_err = e
    raise last_err


def _choose_lanes(n: int, sublane: int):
    """Largest lane count (multiple of 128) dividing n; prefer tile-aligned row counts."""
    best = None
    for cand in _WIDE_LANE_CANDIDATES:          # descending: widest vst/DMA bursts first
        if n % cand:
            continue
        rows = n // cand
        if best is None:
            best = cand
        if rows == 1 or rows % sublane == 0:    # rows aligned to sublane tile: no ragged tiles
            return cand
    return best                                  # may be None -> ragged (n % 128 != 0)


def _relu_2d(x2d, sublane, num_cores, target_block_bytes, vmem_limit,
             sem_candidates, n, itemsize):
    rows, lanes = x2d.shape
    row_bytes = lanes * itemsize
    target_rows = max(sublane, (target_block_bytes // row_bytes) // sublane * sublane)
    if rows <= sublane:
        block_rows = rows                        # full-dim block: always legal
    else:
        block_rows = max(sublane, min(target_rows, (rows // sublane) * sublane))
        if (num_cores > 1 and rows * row_bytes >= (1 << 20)
                and rows >= 2 * num_cores * sublane):
            # >= 2 blocks per TensorCore so each core still double-buffers its DMA.
            per_block = _round_up(_cdiv(rows, 2 * num_cores), sublane)
            block_rows = min(block_rows, per_block)
    grid_rows = _cdiv(rows, block_rows)          # Pallas masks the ragged final block
    return _call_relu(x2d, (block_rows, lanes), (grid_rows,), lambda i: (i, 0),
                      sem_candidates, vmem_limit, n, itemsize)


def _relu_flat(x_flat, sem_candidates, vmem_limit, n, itemsize):
    # Ragged n: 1-D blocks over the flat array, ragged tail masked by Pallas.
    block = n if n <= _RAGGED_BLOCK_ELEMS else _RAGGED_BLOCK_ELEMS  # 256K: multiple of 32*128
    grid = _cdiv(n, block)
    return _call_relu(x_flat, (block,), (grid,), lambda i: (i,),
                      sem_candidates, vmem_limit, n, itemsize)


def _relu_padded(x_flat, sublane, num_cores, target_block_bytes, vmem_limit,
                 sem_candidates, n, itemsize):
    # Safety fallback only: pad to a (rows, 1024) slab, slice the tail off afterwards.
    lanes = 1024
    rows = _cdiv(n, lanes)
    total = rows * lanes
    xp = jnp.pad(x_flat, (0, total - n)) if total != n else x_flat
    out2d = _relu_2d(xp.reshape(rows, lanes), sublane, num_cores,
                     target_block_bytes, vmem_limit, sem_candidates, n, itemsize)
    return out2d.reshape(-1)[:n]


def relu_pallas(x: jax.Array) -> jax.Array:
    """ReLU via a Pallas TPU kernel. Matches F.relu(x) for any shape/dtype."""
    orig_shape = x.shape
    n = x.size
    if n == 0:
        return x
    itemsize = jnp.dtype(x.dtype).itemsize
    sublane = _sublane_tile(x.dtype)
    num_cores, target_block_bytes, vmem_limit, sem_candidates = _tpu_config()

    lanes = _choose_lanes(n, sublane)
    if lanes is not None:
        # Fast path: zero-copy reshape to a lane-dense (rows, lanes) slab.
        x2d = jnp.ravel(x).reshape(n // lanes, lanes)
        out = _relu_2d(x2d, sublane, num_cores, target_block_bytes, vmem_limit,
                       sem_candidates, n, itemsize)
        return out.reshape(orig_shape)

    # Ragged n (not a multiple of 128): run directly on the flat array -- no pad/slice
    # HBM round trip. If the 1-D lowering is rejected on some generation, fall back to
    # the (correct but slower) padded 2-D path so the op always succeeds.
    x_flat = jnp.ravel(x)
    try:
        out = _relu_flat(x_flat, sem_candidates, vmem_limit, n, itemsize)
    except Exception:
        out = _relu_padded(x_flat, sublane, num_cores, target_block_bytes,
                           vmem_limit, sem_candidates, n, itemsize)
    return out.reshape(orig_shape)


if __name__ == "__main__":
    # RELU(out_channels=4) -- parameterless module; forward is F.relu(input_).
    key = jax.random.PRNGKey(0)
    x = jax.random.normal(key, (2, 4, 16, 16), dtype=jnp.float32)  # NCHW

    y = jax.block_until_ready(relu_pallas(x))
    y_ref = jnp.maximum(x, 0.0)
    assert y.shape == x.shape and y.dtype == x.dtype
    assert bool(jnp.allclose(y, y_ref)), "mismatch vs reference ReLU (f32)"

    # Ragged element count (420 elems -> flat 1-D path) and bf16 (packed sublanes).
    k1, k2 = jax.random.split(key)
    x_ragged = jax.random.normal(k1, (3, 4, 7, 5), dtype=jnp.float32)
    y_ragged = jax.block_until_ready(relu_pallas(x_ragged))
    assert y_ragged.shape == x_ragged.shape
    assert bool(jnp.allclose(y_ragged, jnp.maximum(x_ragged, 0.0))), "mismatch (ragged)"

    x_bf16 = jax.random.normal(k2, (2, 4, 16, 16), dtype=jnp.bfloat16)
    y_bf16 = jax.block_until_ready(relu_pallas(x_bf16))
    assert y_bf16.dtype == jnp.bfloat16
    assert bool(jnp.array_equal(y_bf16, jnp.maximum(x_bf16, jnp.bfloat16(0)))), "mismatch (bf16)"

    print("KERNEL_OK")
</pallas_src>

<mosaic_0001>
module attributes {stable_mosaic.version = 11 : i64} {
  func.func @_relu_kernel(%arg0: i32, %arg1: memref<1x2048xf32, #tpu.memory_space<vmem>>, %arg2: memref<1x2048xf32, #tpu.memory_space<vmem>>) attributes {dimension_semantics = [#tpu.dimension_semantics<parallel>], iteration_bounds = array<i64: 1>, scalar_prefetch = 0 : i64, scratch_operands = 0 : i64, tpu.core_type = #tpu.core_type<tc>, window_params = [{transform_indices = @transform_0, window_bounds = array<i64: 1, 2048>}, {transform_indices = @transform_1, window_bounds = array<i64: 1, 2048>}]} {
    %c0 = arith.constant 0 : index
    %c0_0 = arith.constant 0 : index
    %0 = vector.load %arg1[%c0, %c0_0] : memref<1x2048xf32, #tpu.memory_space<vmem>>, vector<1x2048xf32>
    %cst = arith.constant 0.000000e+00 : f32
    %1 = vector.broadcast %cst : f32 to vector<1x2048xf32>
    %2 = arith.maximumf %0, %1 : vector<1x2048xf32>
    %c0_1 = arith.constant 0 : index
    %c0_2 = arith.constant 0 : index
    %3 = vector.load %arg2[%c0_1, %c0_2] : memref<1x2048xf32, #tpu.memory_space<vmem>>, vector<1x2048xf32>
    tpu.vector_store %arg2[%c0_1, %c0_2], %2 {strides = array<i32>} : memref<1x2048xf32, #tpu.memory_space<vmem>>, vector<1x2048xf32>,
    return
  }
  func.func @transform_0(%arg0: i32) -> (i32, i32) {
    %c0_i32 = arith.constant 0 : i32
    %c0_i32_0 = arith.constant 0 : i32
    return %arg0, %c0_i32 : i32, i32
  }
  func.func @transform_1(%arg0: i32) -> (i32, i32) {
    %c0_i32 = arith.constant 0 : i32
    %c0_i32_0 = arith.constant 0 : i32
    return %arg0, %c0_i32 : i32, i32
  }
}

</mosaic_0001>

<llo_original>
// kernel: tpu_custom_call.1
$region0: #{tpu_custom_call.1}
  #allocation0 [shape = 'u32[]', space=smem, size = 0x4, offset = 0x4, fixed_abs, tag = 'smem constant byte address 0x4 - core index']
  #allocation1 [shape = 'u32[144,128]{1,0:T(1,128)}', space=vmem, size = 0x12000, scoped, tag = 'internal scratch']
  %s0 = inlined_call_operand.hbm [shape: f32[1,2048], index: 0, kind: input, shape index: {}]
  %s1 = inlined_call_operand.hbm [shape: f32[1,2048], index: 1, kind: output, shape index: {}]
  %s2 = sld [smem:[#allocation0]]
  $region18: #{tpu_custom_call.1} parent=0
    _
  %s4 = ssub.s32 1, %s2
  %s5 = scalar_select 0, %s4, %s2
  $region1: #{tpu_custom_call.1} parent=0
    #allocation2 [shape = 'u8[8192]{0}', space=vmem, size = 0x2000, scoped, tag = 'input window, operand 0, single buffered']
    #allocation3 [shape = 's32[1]{0}', space=sflag, size = 0x4, scoped, tag = 'scoped memory for tpu_custom_call.1']
    #allocation4 [shape = 's32[1]{0}', space=sflag, size = 0x4, scoped, tag = 'scoped memory for tpu_custom_call.1']
    #allocation5 [shape = 'u8[8192]{0}', space=vmem, size = 0x2000, scoped, tag = 'output window, operand 0, single buffered']
    %6 = vsyncpa [#allocation3], 0
    %7 = vsyncpa [#allocation4], 0
    // Predicated region
    $region2: #{tpu_custom_call.1} parent=1 // pred_check
      _
    $region3: #{tpu_custom_call.1} parent=1 // pred_check_branch
      %9 = sbr.rel (0) target = $region5
    $region4: #{tpu_custom_call.1} parent=1 // pred_region
      %s11 = ssub.s32 256, 256
      %12 = vsyncadd [#allocation3], %s11
      %s14 = sshll.u32 [#allocation2], 4
      %s15 = int_to_ptr.vmem [resolvable:$true] %s14
      %17 = dma.hbm_to_vmem [thread:$0]  %s0, 256, %s15, [#allocation3]
    $region5: #{tpu_custom_call.1} parent=1 // pred_fallthru
      _
    // Predicated region
    $region6: #{tpu_custom_call.1} parent=1 // pred_check
      _
    $region7: #{tpu_custom_call.1} parent=1 // pred_check_branch
      %19 = sbr.rel (0) target = $region9
    $region8: #{tpu_custom_call.1} parent=1 // pred_region
      %20 = dma.done [#allocation3], 256
    $region9: #{tpu_custom_call.1} parent=1 // pred_fallthru
      _
    %v21 = vld [vmem:[#allocation2] sm:$0xff]
    %v22 = vld [vmem:[#allocation2 + $0x8] sm:$0xff]
    %v23 = vmax.f32 %v21, 0.0
    %v24 = vmax.f32 %v22, 0.0
    %25 = vst [vmem:[#allocation5] sm:$0xff] %v23
    %26 = vst [vmem:[#allocation5 + $0x8] sm:$0xff] %v24
    // Predicated region
    $region10: #{tpu_custom_call.1} parent=1 // pred_check
      _
    $region11: #{tpu_custom_call.1} parent=1 // pred_check_branch
      %28 = sbr.rel (0) target = $region13
    $region12: #{tpu_custom_call.1} parent=1 // pred_region
      %s30 = ssub.s32 256, 256
      %31 = vsyncadd [#allocation4], %s30
      %s33 = sshll.u32 [#allocation5], 4
      %s34 = int_to_ptr.vmem [resolvable:$true] %s33
      %36 = dma.vmem_to_hbm [thread:$0]  %s34, 256, %s1, [#allocation4]
    $region13: #{tpu_custom_call.1} parent=1 // pred_fallthru
      _
    // Predicated region
    $region14: #{tpu_custom_call.1} parent=1 // pred_check
      _
    $region15: #{tpu_custom_call.1} parent=1 // pred_check_branch
      %38 = sbr.rel (0) target = $region17
    $region16: #{tpu_custom_call.1} parent=1 // pred_region
      %39 = dma.done [#allocation4], 256
    $region17: #{tpu_custom_call.1} parent=1 // pred_fallthru
      _
    %40 = vsyncpa [#allocation3], 1
    %41 = vsyncpa [#allocation4], 1

</llo_original>
